<compile_context>
chip_gen: v6e
topology: v6e:2x2x1
jax: 0.10.0
libtpu: 0.0.40
codegen_flags: <defaults>
</compile_context>

<pallas_src>
import jax
import jax.numpy as jnp
from jax.experimental import pallas as pl
from jax.experimental.pallas import tpu as pltpu


def onedcnn_kernel(x_ref, w1_ref, s1_ref, t1_ref,
                   w2_ref, s2_ref, t2_ref,
                   wf1_ref, bf1_ref, wf2_ref, bf2_ref,
                   out_ref, xp_ref, p1_ref, hp_ref, p2_ref):
    TB, L, Cin = x_ref.shape
    C1 = w1_ref.shape[1]          # 32
    C2 = w2_ref.shape[1]          # 64
    NF = wf1_ref.shape[2]         # 128
    L2 = L // 2
    L4 = L2 // 2

    # ---- conv1 halo padding in VMEM (input arrives unpadded, as bf16) ----
    xp_ref[:, 0:1, :] = jnp.zeros((TB, 1, Cin), jnp.float32)
    xp_ref[:, L + 1:L + 2, :] = jnp.zeros((TB, 1, Cin), jnp.float32)
    xp_ref[:, 1:L + 1, :] = x_ref[...].astype(jnp.float32)

    # ---- conv1: one im2col MXU matmul (TB*L, 3*Cin) @ (3*Cin, C1) ----
    lhs1 = jnp.concatenate(
        [xp_ref[:, 0:L, :], xp_ref[:, 1:L + 1, :], xp_ref[:, 2:L + 2, :]],
        axis=-1).reshape(TB * L, 3 * Cin)
    h = jnp.dot(lhs1.astype(jnp.bfloat16), w1_ref[...],
                preferred_element_type=jnp.float32)            # (TB*L, C1) f32
    # ---- bn1 (conv bias folded into t1) + relu1, f32 elementwise ----
    h = jnp.maximum(h * s1_ref[...] + t1_ref[...], 0.0)

    # ---- maxpool1 (k=2, s=2): max of two stride-2 row views (VPU only) ----
    p1_ref[...] = h
    hmax = jnp.maximum(p1_ref[pl.ds(0, TB * L2, stride=2), :],
                       p1_ref[pl.ds(1, TB * L2, stride=2), :])  # (TB*L2, C1)

    # ---- conv2 padding=1 via pre-zeroed scratch rows ----
    # (Re-zeroed every grid step on purpose: on v7x the parallel batch axis is
    #  sharded across two TensorCores, each with its own scratch, so a
    #  program_id==0 guard would leave one core's halo rows uninitialized.)
    hp_ref[:, 0:1, :] = jnp.zeros((TB, 1, C1), jnp.float32)
    hp_ref[:, L2 + 1:L2 + 2, :] = jnp.zeros((TB, 1, C1), jnp.float32)
    hp_ref[:, 1:L2 + 1, :] = hmax.reshape(TB, L2, C1)

    # ---- conv2: one im2col MXU matmul (TB*L2, 3*C1) @ (3*C1, C2) ----
    lhs2 = jnp.concatenate(
        [hp_ref[:, 0:L2, :], hp_ref[:, 1:L2 + 1, :], hp_ref[:, 2:L2 + 2, :]],
        axis=-1).reshape(TB * L2, 3 * C1)
    g = jnp.dot(lhs2.astype(jnp.bfloat16), w2_ref[...],
                preferred_element_type=jnp.float32)            # (TB*L2, C2) f32
    # ---- bn2 (bias folded) + relu2 ----
    g = jnp.maximum(g * s2_ref[...] + t2_ref[...], 0.0)
    p2_ref[...] = g

    # ---- maxpool2 fused into fc1: L4 accumulated (TB,C2)@(C2,NF) matmuls.
    #      Avoids the (TB, L4*C2) flatten relayout entirely; wf1 is packed
    #      (L4, C2, NF) in the wrapper so semantics match torch's x.view. ----
    f = jnp.zeros((TB, NF), jnp.float32)
    for l in range(L4):                       # static, small trip count
        gl = jnp.maximum(p2_ref[pl.ds(2 * l, TB, stride=L2), :],
                         p2_ref[pl.ds(2 * l + 1, TB, stride=L2), :])  # (TB, C2)
        f = f + jnp.dot(gl.astype(jnp.bfloat16), wf1_ref[l],
                        preferred_element_type=jnp.float32)
    # ---- fc1 bias + relu3 ----
    f = jnp.maximum(f + bf1_ref[...], 0.0)
    # TODO(synk): Dropout(p=0.5) is stochastic in train mode; identity here (eval).
    # ---- fc2 (output lane-padded to 128; extra columns are exactly zero) ----
    out = jnp.dot(f.astype(jnp.bfloat16), wf2_ref[...],
                  preferred_element_type=jnp.float32) + bf2_ref[...]
    out_ref[...] = out.astype(out_ref.dtype)


def init_params(key, input_channels, num_classes, L):
    """Deterministic parameters in PyTorch layouts."""
    ks = jax.random.split(key, 12)

    def uni(k, shape, fan_in):
        b = 1.0 / jnp.sqrt(jnp.float32(fan_in))
        return jax.random.uniform(k, shape, jnp.float32, -b, b)

    L4 = L // 4
    return {
        # conv1: (out=32, in=Cin, k=3)
        "w1": uni(ks[0], (32, input_channels, 3), input_channels * 3),
        "b1": uni(ks[1], (32,), input_channels * 3),
        "bn1_gamma": 1.0 + 0.1 * jax.random.normal(ks[2], (32,), jnp.float32),
        "bn1_beta": 0.1 * jax.random.normal(ks[3], (32,), jnp.float32),
        "bn1_mean": jnp.zeros((32,), jnp.float32),
        "bn1_var": jnp.ones((32,), jnp.float32),
        # conv2: (out=64, in=32, k=3)
        "w2": uni(ks[4], (64, 32, 3), 32 * 3),
        "b2": uni(ks[5], (64,), 32 * 3),
        "bn2_gamma": 1.0 + 0.1 * jax.random.normal(ks[6], (64,), jnp.float32),
        "bn2_beta": 0.1 * jax.random.normal(ks[7], (64,), jnp.float32),
        "bn2_mean": jnp.zeros((64,), jnp.float32),
        "bn2_var": jnp.ones((64,), jnp.float32),
        # fc1: (128, 64*(L//4)), fc2: (num_classes, 128)  (torch [out, in])
        "wf1": uni(ks[8], (128, 64 * L4), 64 * L4),
        "bf1": uni(ks[9], (128,), 64 * L4),
        "wf2": uni(ks[10], (num_classes, 128), 128),
        "bf2": uni(ks[11], (num_classes,), 128),
    }


def onedcnn_forward(x_ncl, params, num_classes):
    """x_ncl: (B, C_in, L) float32, PyTorch NCL layout."""
    B, Cin, L = x_ncl.shape
    assert L % 4 == 0, "both MaxPool1d(2) stages + fc1 flatten require L % 4 == 0"
    L2, L4 = L // 2, L // 4
    C1, C2, NF = 32, 64, 128
    NCP = 128                       # lane-padded output width (unmasked stores)
    eps = 1e-5

    # Batch tile: big enough to feed the MXU (per-sample VMEM footprint is only
    # ~9 KB at these channel counts). Large batches are split so the parallel
    # batch axis keeps >= 2 grid steps (feeds v7x's second TensorCore). When
    # multiple grid steps exist, TB is a multiple of 8 (output sublane tiling).
    TB_cap = 512
    if B > TB_cap:
        TB = TB_cap
    elif B >= 256:
        TB = ((B + 1) // 2 + 7) // 8 * 8
    else:
        TB = B
    Bp = ((B + TB - 1) // TB) * TB
    nb = Bp // TB

    # ---- glue: layout changes, im2col weight packing, BN+bias folding ----
    # Input DMA'd as bf16 (MXU operands are bf16 anyway); the conv1 L-halo is
    # padded in-kernel, so only a batch pad (usually a no-op) happens here.
    x_nlc = jnp.transpose(x_ncl, (0, 2, 1)).astype(jnp.bfloat16)   # (B, L, Cin)
    xb = jnp.pad(x_nlc, ((0, Bp - B), (0, 0), (0, 0)))

    # conv weights (Cout, Cin, K) -> (K*Cin, Cout), row index k*Cin + c
    w1 = jnp.transpose(params["w1"], (2, 1, 0)).reshape(3 * Cin, C1).astype(jnp.bfloat16)
    w2 = jnp.transpose(params["w2"], (2, 1, 0)).reshape(3 * C1, C2).astype(jnp.bfloat16)

    # BN eval-mode fold, with the conv bias folded into the shift:
    #   y = s*(conv + b - mean) + beta = s*conv + (beta + s*(b - mean))
    s1v = params["bn1_gamma"] / jnp.sqrt(params["bn1_var"] + eps)
    t1v = params["bn1_beta"] + s1v * (params["b1"] - params["bn1_mean"])
    s2v = params["bn2_gamma"] / jnp.sqrt(params["bn2_var"] + eps)
    t2v = params["bn2_beta"] + s2v * (params["b2"] - params["bn2_mean"])
    s1 = s1v[None, :].astype(jnp.float32)
    t1 = t1v[None, :].astype(jnp.float32)
    s2 = s2v[None, :].astype(jnp.float32)
    t2 = t2v[None, :].astype(jnp.float32)

    # fc1: torch flatten column index is c*L4 + l (channel-major x.view).
    # Packed (L4, C2, NF): wf1[l, c, :] = torch_wf1[:, c*L4 + l].
    wf1 = jnp.transpose(params["wf1"].reshape(NF, C2, L4),
                        (2, 1, 0)).astype(jnp.bfloat16)
    bf1 = params["bf1"][None, :].astype(jnp.float32)
    # fc2 -> (128, NCP) with zero-padded extra output columns (lane-dense store)
    wf2 = jnp.pad(jnp.transpose(params["wf2"], (1, 0)),
                  ((0, 0), (0, NCP - num_classes))).astype(jnp.bfloat16)
    bf2 = jnp.pad(params["bf2"], (0, NCP - num_classes))[None, :].astype(jnp.float32)

    def full_spec(a):
        nd = a.ndim
        return pl.BlockSpec(a.shape, lambda i, nd=nd: (0,) * nd)

    flops = 2 * Bp * (L * 3 * Cin * C1 + L2 * 3 * C1 * C2
                      + L4 * C2 * NF + NF * NCP)
    bytes_accessed = (xb.size * 2
                      + (w1.size + w2.size + wf1.size + wf2.size) * 2
                      + (s1.size + t1.size + s2.size + t2.size
                         + bf1.size + bf2.size) * 4
                      + Bp * NCP * 4)

    # VMEM budget: in/out blocks + resident weights are double-buffered,
    # scratches are single. Keep the explicit limit conservative so it also
    # fits v7x's 64 MiB VMEM (and v5e's 16 MiB scoped default gets raised).
    vmem_est = (2 * TB * L * Cin * 2                 # input blocks (bf16)
                + 2 * TB * NCP * 4                   # output blocks
                + 2 * (w1.size + w2.size + wf1.size + wf2.size) * 2
                + 2 * (s1.size + t1.size + s2.size + t2.size
                       + bf1.size + bf2.size) * 4
                + TB * (L + 2) * Cin * 4             # conv1 padded-input scratch
                + TB * L * C1 * 4                    # pre-pool1 rows
                + TB * (L2 + 2) * C1 * 4             # conv2 padded-input scratch
                + TB * L2 * C2 * 4)                  # pre-pool2 rows
    vmem_limit = int(min(48 * 2**20, max(16 * 2**20, 2 * vmem_est)))

    out = pl.pallas_call(
        onedcnn_kernel,
        out_shape=jax.ShapeDtypeStruct((Bp, NCP), jnp.float32),
        grid_spec=pltpu.PrefetchScalarGridSpec(
            num_scalar_prefetch=0,
            grid=(nb,),
            in_specs=[
                pl.BlockSpec((TB, L, Cin), lambda i: (i, 0, 0)),   # activations
                full_spec(w1), full_spec(s1), full_spec(t1),       # resident
                full_spec(w2), full_spec(s2), full_spec(t2),
                full_spec(wf1), full_spec(bf1), full_spec(wf2), full_spec(bf2),
            ],
            out_specs=pl.BlockSpec((TB, NCP), lambda i: (i, 0)),
            scratch_shapes=[
                pltpu.VMEM((TB, L + 2, Cin), jnp.float32),     # conv1 padded input
                pltpu.VMEM((TB * L, C1), jnp.float32),         # pre-pool1 rows
                pltpu.VMEM((TB, L2 + 2, C1), jnp.float32),     # conv2 padded input
                pltpu.VMEM((TB * L2, C2), jnp.float32),        # pre-pool2 rows
            ],
        ),
        compiler_params=pltpu.CompilerParams(
            dimension_semantics=("parallel",),
            vmem_limit_bytes=vmem_limit),
        cost_estimate=pl.CostEstimate(flops=flops, transcendentals=0,
                                      bytes_accessed=bytes_accessed),
    )(xb, w1, s1, t1, w2, s2, t2, wf1, bf1, wf2, bf2)

    return out[:B, :num_classes]


def reference_forward(x_ncl, params):
    """Pure-JAX f32 reference with PyTorch semantics (eval mode)."""
    eps = 1e-5
    B, Cin, L = x_ncl.shape
    x = jnp.transpose(x_ncl, (0, 2, 1))                           # (B, L, Cin)

    def conv1d(x, w, b):                                          # w (Cout,Cin,3), pad=1
        Lx = x.shape[1]
        xp = jnp.pad(x, ((0, 0), (1, 1), (0, 0)))
        return sum(jnp.einsum('blc,oc->blo', xp[:, k:k + Lx, :], w[:, :, k])
                   for k in range(3)) + b[None, None, :]

    def bn(x, g, b, m, v):
        return (x - m) / jnp.sqrt(v + eps) * g + b

    h = conv1d(x, params["w1"], params["b1"])
    h = jnp.maximum(bn(h, params["bn1_gamma"], params["bn1_beta"],
                       params["bn1_mean"], params["bn1_var"]), 0.0)
    h = jnp.maximum(h[:, 0::2, :], h[:, 1::2, :])
    g = conv1d(h, params["w2"], params["b2"])
    g = jnp.maximum(bn(g, params["bn2_gamma"], params["bn2_beta"],
                       params["bn2_mean"], params["bn2_var"]), 0.0)
    g = jnp.maximum(g[:, 0::2, :], g[:, 1::2, :])                 # (B, L//4, 64)
    flat = jnp.transpose(g, (0, 2, 1)).reshape(B, -1)             # torch x.view order
    f = jnp.maximum(flat @ params["wf1"].T + params["bf1"], 0.0)
    return f @ params["wf2"].T + params["bf2"]


if __name__ == "__main__":
    input_channels = 16
    num_classes = 4
    # fc1 = Linear(64 * (input_channels // 4), ...) implies seq length == input_channels
    L = input_channels

    key = jax.random.PRNGKey(0)
    kx, kp, kx2 = jax.random.split(key, 3)
    params = init_params(kp, input_channels, num_classes, L)

    # Small-batch check (single grid step).
    B = 2
    x = jax.random.normal(kx, (B, input_channels, L), jnp.float32)   # NCL
    out = jax.block_until_ready(onedcnn_forward(x, params, num_classes))
    ref = reference_forward(x, params)
    assert out.shape == (B, num_classes)
    assert jnp.all(jnp.isfinite(out))
    # bf16 MXU operands / f32 accumulation: loose-but-meaningful tolerance.
    assert jnp.allclose(out, ref, rtol=0.1, atol=0.1)

    # Multi-block check (exercises the batch grid / parallel axis: TB=128, nb=2).
    B2 = 256
    x2 = jax.random.normal(kx2, (B2, input_channels, L), jnp.float32)
    out2 = jax.block_until_ready(onedcnn_forward(x2, params, num_classes))
    ref2 = reference_forward(x2, params)
    assert out2.shape == (B2, num_classes)
    assert jnp.all(jnp.isfinite(out2))
    assert jnp.allclose(out2, ref2, rtol=0.1, atol=0.1)

    print("KERNEL_OK")
</pallas_src>

<mosaic_0001>
module attributes {stable_mosaic.version = 11 : i64} {
  func.func @onedcnn_kernel(%arg0: i32, %arg1: memref<2x16x16xbf16, #tpu.memory_space<vmem>>, %arg2: memref<48x32xbf16, #tpu.memory_space<vmem>>, %arg3: memref<1x32xf32, #tpu.memory_space<vmem>>, %arg4: memref<1x32xf32, #tpu.memory_space<vmem>>, %arg5: memref<96x64xbf16, #tpu.memory_space<vmem>>, %arg6: memref<1x64xf32, #tpu.memory_space<vmem>>, %arg7: memref<1x64xf32, #tpu.memory_space<vmem>>, %arg8: memref<4x64x128xbf16, #tpu.memory_space<vmem>>, %arg9: memref<1x128xf32, #tpu.memory_space<vmem>>, %arg10: memref<128x128xbf16, #tpu.memory_space<vmem>>, %arg11: memref<1x128xf32, #tpu.memory_space<vmem>>, %arg12: memref<2x128xf32, #tpu.memory_space<vmem>>, %arg13: memref<2x18x16xf32, #tpu.memory_space<vmem>>, %arg14: memref<32x32xf32, #tpu.memory_space<vmem>>, %arg15: memref<2x10x32xf32, #tpu.memory_space<vmem>>, %arg16: memref<16x64xf32, #tpu.memory_space<vmem>>) attributes {dimension_semantics = [#tpu.dimension_semantics<parallel>], iteration_bounds = array<i64: 1>, scalar_prefetch = 0 : i64, scratch_operands = 4 : i64, tpu.core_type = #tpu.core_type<tc>, window_params = [{transform_indices = @transform_0, window_bounds = array<i64: 2, 16, 16>}, {pipeline_mode = #tpu.pipeline_mode<synchronous>, transform_indices = @transform_1, window_bounds = array<i64: 48, 32>}, {pipeline_mode = #tpu.pipeline_mode<synchronous>, transform_indices = @transform_2, window_bounds = array<i64: 1, 32>}, {pipeline_mode = #tpu.pipeline_mode<synchronous>, transform_indices = @transform_3, window_bounds = array<i64: 1, 32>}, {pipeline_mode = #tpu.pipeline_mode<synchronous>, transform_indices = @transform_4, window_bounds = array<i64: 96, 64>}, {pipeline_mode = #tpu.pipeline_mode<synchronous>, transform_indices = @transform_5, window_bounds = array<i64: 1, 64>}, {pipeline_mode = #tpu.pipeline_mode<synchronous>, transform_indices = @transform_6, window_bounds = array<i64: 1, 64>}, {pipeline_mode = #tpu.pipeline_mode<synchronous>, transform_indices = @transform_7, window_bounds = array<i64: 4, 64, 128>}, {pipeline_mode = #tpu.pipeline_mode<synchronous>, transform_indices = @transform_8, window_bounds = array<i64: 1, 128>}, {pipeline_mode = #tpu.pipeline_mode<synchronous>, transform_indices = @transform_9, window_bounds = array<i64: 128, 128>}, {pipeline_mode = #tpu.pipeline_mode<synchronous>, transform_indices = @transform_10, window_bounds = array<i64: 1, 128>}, {transform_indices = @transform_11, window_bounds = array<i64: 2, 128>}]} {
    %cst = arith.constant 0.000000e+00 : f32
    %0 = vector.broadcast %cst : f32 to vector<2x1x16xf32>
    %c0 = arith.constant 0 : index
    %c0_0 = arith.constant 0 : index
    %c0_1 = arith.constant 0 : index
    %1 = vector.load %arg13[%c0, %c0_0, %c0_1] : memref<2x18x16xf32, #tpu.memory_space<vmem>>, vector<2x1x16xf32>
    tpu.vector_store %arg13[%c0, %c0_0, %c0_1], %0 {strides = array<i32>} : memref<2x18x16xf32, #tpu.memory_space<vmem>>, vector<2x1x16xf32>,
    %cst_2 = arith.constant 0.000000e+00 : f32
    %2 = vector.broadcast %cst_2 : f32 to vector<2x1x16xf32>
    %c0_3 = arith.constant 0 : index
    %c17 = arith.constant 17 : index
    %c0_4 = arith.constant 0 : index
    %3 = vector.load %arg13[%c0_3, %c17, %c0_4] : memref<2x18x16xf32, #tpu.memory_space<vmem>>, vector<2x1x16xf32>
    tpu.vector_store %arg13[%c0_3, %c17, %c0_4], %2 {strides = array<i32>} : memref<2x18x16xf32, #tpu.memory_space<vmem>>, vector<2x1x16xf32>,
    %c0_5 = arith.constant 0 : index
    %c0_6 = arith.constant 0 : index
    %c0_7 = arith.constant 0 : index
    %4 = vector.load %arg1[%c0_5, %c0_6, %c0_7] : memref<2x16x16xbf16, #tpu.memory_space<vmem>>, vector<2x16x16xbf16>
    %5 = arith.extf %4 : vector<2x16x16xbf16> to vector<2x16x16xf32>
    %c0_8 = arith.constant 0 : index
    %c1 = arith.constant 1 : index
    %c0_9 = arith.constant 0 : index
    %6 = vector.load %arg13[%c0_8, %c1, %c0_9] : memref<2x18x16xf32, #tpu.memory_space<vmem>>, vector<2x16x16xf32>
    tpu.vector_store %arg13[%c0_8, %c1, %c0_9], %5 {strides = array<i32>} : memref<2x18x16xf32, #tpu.memory_space<vmem>>, vector<2x16x16xf32>,
    %c0_10 = arith.constant 0 : index
    %c0_11 = arith.constant 0 : index
    %c0_12 = arith.constant 0 : index
    %7 = vector.load %arg13[%c0_10, %c0_11, %c0_12] : memref<2x18x16xf32, #tpu.memory_space<vmem>>, vector<2x16x16xf32>
    %c0_13 = arith.constant 0 : index
    %c1_14 = arith.constant 1 : index
    %c0_15 = arith.constant 0 : index
    %8 = vector.load %arg13[%c0_13, %c1_14, %c0_15] : memref<2x18x16xf32, #tpu.memory_space<vmem>>, vector<2x16x16xf32>
    %c0_16 = arith.constant 0 : index
    %c2 = arith.constant 2 : index
    %c0_17 = arith.constant 0 : index
    %9 = vector.load %arg13[%c0_16, %c2, %c0_17] : memref<2x18x16xf32, #tpu.memory_space<vmem>>, vector<2x16x16xf32>
    %10 = tpu.concatenate %7, %8, %9 in 2 : vector<2x16x16xf32>, vector<2x16x16xf32>, vector<2x16x16xf32> -> vector<2x16x48xf32>
    %11 = vector.shape_cast %10 : vector<2x16x48xf32> to vector<32x48xf32>
    %12 = arith.truncf %11 : vector<32x48xf32> to vector<32x48xbf16>
    %c0_18 = arith.constant 0 : index
    %c0_19 = arith.constant 0 : index
    %13 = vector.load %arg2[%c0_18, %c0_19] : memref<48x32xbf16, #tpu.memory_space<vmem>>, vector<48x32xbf16>
    %cst_20 = arith.constant dense<0.000000e+00> : vector<32x32xf32>
    %14 = tpu.matmul %12, %13, %cst_20 {dimension_numbers = #tpu.dot_dimension_numbers<[1], [0], [0], [1], [0, 0, 1, 1], [], []>} : vector<32x48xbf16>, vector<48x32xbf16>, vector<32x32xf32> -> vector<32x32xf32>
    %c0_21 = arith.constant 0 : index
    %c0_22 = arith.constant 0 : index
    %15 = vector.load %arg3[%c0_21, %c0_22] : memref<1x32xf32, #tpu.memory_space<vmem>>, vector<1x32xf32>
    %16 = vector.broadcast %15 : vector<1x32xf32> to vector<32x32xf32>
    %17 = arith.mulf %14, %16 : vector<32x32xf32>
    %c0_23 = arith.constant 0 : index
    %c0_24 = arith.constant 0 : index
    %18 = vector.load %arg4[%c0_23, %c0_24] : memref<1x32xf32, #tpu.memory_space<vmem>>, vector<1x32xf32>
    %19 = vector.broadcast %18 : vector<1x32xf32> to vector<32x32xf32>
    %20 = arith.addf %17, %19 : vector<32x32xf32>
    %cst_25 = arith.constant 0.000000e+00 : f32
    %21 = vector.broadcast %cst_25 : f32 to vector<32x32xf32>
    %22 = arith.maximumf %20, %21 : vector<32x32xf32>
    %c0_26 = arith.constant 0 : index
    %c0_27 = arith.constant 0 : index
    %23 = vector.load %arg14[%c0_26, %c0_27] : memref<32x32xf32, #tpu.memory_space<vmem>>, vector<32x32xf32>
    tpu.vector_store %arg14[%c0_26, %c0_27], %22 {strides = array<i32>} : memref<32x32xf32, #tpu.memory_space<vmem>>, vector<32x32xf32>,
    %c0_28 = arith.constant 0 : index
    %c0_29 = arith.constant 0 : index
    %24 = tpu.strided_load %arg14[%c0_28, %c0_29] {strides = array<i32: 2, 1>} : memref<32x32xf32, #tpu.memory_space<vmem>>, vector<16x32xf32>
    %c1_30 = arith.constant 1 : index
    %c0_31 = arith.constant 0 : index
    %25 = tpu.strided_load %arg14[%c1_30, %c0_31] {strides = array<i32: 2, 1>} : memref<32x32xf32, #tpu.memory_space<vmem>>, vector<16x32xf32>
    %26 = arith.maximumf %24, %25 : vector<16x32xf32>
    %cst_32 = arith.constant 0.000000e+00 : f32
    %27 = vector.broadcast %cst_32 : f32 to vector<2x1x32xf32>
    %c0_33 = arith.constant 0 : index
    %c0_34 = arith.constant 0 : index
    %c0_35 = arith.constant 0 : index
    %28 = vector.load %arg15[%c0_33, %c0_34, %c0_35] : memref<2x10x32xf32, #tpu.memory_space<vmem>>, vector<2x1x32xf32>
    tpu.vector_store %arg15[%c0_33, %c0_34, %c0_35], %27 {strides = array<i32>} : memref<2x10x32xf32, #tpu.memory_space<vmem>>, vector<2x1x32xf32>,
    %cst_36 = arith.constant 0.000000e+00 : f32
    %29 = vector.broadcast %cst_36 : f32 to vector<2x1x32xf32>
    %c0_37 = arith.constant 0 : index
    %c9 = arith.constant 9 : index
    %c0_38 = arith.constant 0 : index
    %30 = vector.load %arg15[%c0_37, %c9, %c0_38] : memref<2x10x32xf32, #tpu.memory_space<vmem>>, vector<2x1x32xf32>
    tpu.vector_store %arg15[%c0_37, %c9, %c0_38], %29 {strides = array<i32>} : memref<2x10x32xf32, #tpu.memory_space<vmem>>, vector<2x1x32xf32>,
    %31 = vector.shape_cast %26 : vector<16x32xf32> to vector<2x8x32xf32>
    %c0_39 = arith.constant 0 : index
    %c1_40 = arith.constant 1 : index
    %c0_41 = arith.constant 0 : index
    %32 = vector.load %arg15[%c0_39, %c1_40, %c0_41] : memref<2x10x32xf32, #tpu.memory_space<vmem>>, vector<2x8x32xf32>
    tpu.vector_store %arg15[%c0_39, %c1_40, %c0_41], %31 {strides = array<i32>} : memref<2x10x32xf32, #tpu.memory_space<vmem>>, vector<2x8x32xf32>,
    %c0_42 = arith.constant 0 : index
    %c0_43 = arith.constant 0 : index
    %c0_44 = arith.constant 0 : index
    %33 = vector.load %arg15[%c0_42, %c0_43, %c0_44] : memref<2x10x32xf32, #tpu.memory_space<vmem>>, vector<2x8x32xf32>
    %c0_45 = arith.constant 0 : index
    %c1_46 = arith.constant 1 : index
    %c0_47 = arith.constant 0 : index
    %34 = vector.load %arg15[%c0_45, %c1_46, %c0_47] : memref<2x10x32xf32, #tpu.memory_space<vmem>>, vector<2x8x32xf32>
    %c0_48 = arith.constant 0 : index
    %c2_49 = arith.constant 2 : index
    %c0_50 = arith.constant 0 : index
    %35 = vector.load %arg15[%c0_48, %c2_49, %c0_50] : memref<2x10x32xf32, #tpu.memory_space<vmem>>, vector<2x8x32xf32>
    %36 = tpu.concatenate %33, %34, %35 in 2 : vector<2x8x32xf32>, vector<2x8x32xf32>, vector<2x8x32xf32> -> vector<2x8x96xf32>
    %37 = vector.shape_cast %36 : vector<2x8x96xf32> to vector<16x96xf32>
    %38 = arith.truncf %37 : vector<16x96xf32> to vector<16x96xbf16>
    %c0_51 = arith.constant 0 : index
    %c0_52 = arith.constant 0 : index
    %39 = vector.load %arg5[%c0_51, %c0_52] : memref<96x64xbf16, #tpu.memory_space<vmem>>, vector<96x64xbf16>
    %cst_53 = arith.constant dense<0.000000e+00> : vector<16x64xf32>
    %40 = tpu.matmul %38, %39, %cst_53 {dimension_numbers = #tpu.dot_dimension_numbers<[1], [0], [0], [1], [0, 0, 1, 1], [], []>} : vector<16x96xbf16>, vector<96x64xbf16>, vector<16x64xf32> -> vector<16x64xf32>
    %c0_54 = arith.constant 0 : index
    %c0_55 = arith.constant 0 : index
    %41 = vector.load %arg6[%c0_54, %c0_55] : memref<1x64xf32, #tpu.memory_space<vmem>>, vector<1x64xf32>
    %42 = vector.broadcast %41 : vector<1x64xf32> to vector<16x64xf32>
    %43 = arith.mulf %40, %42 : vector<16x64xf32>
    %c0_56 = arith.constant 0 : index
    %c0_57 = arith.constant 0 : index
    %44 = vector.load %arg7[%c0_56, %c0_57] : memref<1x64xf32, #tpu.memory_space<vmem>>, vector<1x64xf32>
    %45 = vector.broadcast %44 : vector<1x64xf32> to vector<16x64xf32>
    %46 = arith.addf %43, %45 : vector<16x64xf32>
    %cst_58 = arith.constant 0.000000e+00 : f32
    %47 = vector.broadcast %cst_58 : f32 to vector<16x64xf32>
    %48 = arith.maximumf %46, %47 : vector<16x64xf32>
    %c0_59 = arith.constant 0 : index
    %c0_60 = arith.constant 0 : index
    %49 = vector.load %arg16[%c0_59, %c0_60] : memref<16x64xf32, #tpu.memory_space<vmem>>, vector<16x64xf32>
    tpu.vector_store %arg16[%c0_59, %c0_60], %48 {strides = array<i32>} : memref<16x64xf32, #tpu.memory_space<vmem>>, vector<16x64xf32>,
    %cst_61 = arith.constant 0.000000e+00 : f32
    %50 = vector.broadcast %cst_61 : f32 to vector<2x128xf32>
    %c0_62 = arith.constant 0 : index
    %c0_63 = arith.constant 0 : index
    %51 = tpu.strided_load %arg16[%c0_62, %c0_63] {strides = array<i32: 8, 1>} : memref<16x64xf32, #tpu.memory_space<vmem>>, vector<2x64xf32>
    %c1_64 = arith.constant 1 : index
    %c0_65 = arith.constant 0 : index
    %52 = tpu.strided_load %arg16[%c1_64, %c0_65] {strides = array<i32: 8, 1>} : memref<16x64xf32, #tpu.memory_space<vmem>>, vector<2x64xf32>
    %53 = arith.maximumf %51, %52 : vector<2x64xf32>
    %54 = arith.truncf %53 : vector<2x64xf32> to vector<2x64xbf16>
    %c0_66 = arith.constant 0 : index
    %c0_67 = arith.constant 0 : index
    %c0_68 = arith.constant 0 : index
    %55 = vector.load %arg8[%c0_66, %c0_67, %c0_68] : memref<4x64x128xbf16, #tpu.memory_space<vmem>>, vector<1x64x128xbf16>
    %56 = vector.shape_cast %55 : vector<1x64x128xbf16> to vector<64x128xbf16>
    %cst_69 = arith.constant dense<0.000000e+00> : vector<2x128xf32>
    %57 = tpu.matmul %54, %56, %cst_69 {dimension_numbers = #tpu.dot_dimension_numbers<[1], [0], [0], [1], [0, 0, 1, 1], [], []>} : vector<2x64xbf16>, vector<64x128xbf16>, vector<2x128xf32> -> vector<2x128xf32>
    %58 = arith.addf %50, %57 : vector<2x128xf32>
    %c2_70 = arith.constant 2 : index
    %c0_71 = arith.constant 0 : index
    %59 = tpu.strided_load %arg16[%c2_70, %c0_71] {strides = array<i32: 8, 1>} : memref<16x64xf32, #tpu.memory_space<vmem>>, vector<2x64xf32>
    %c3 = arith.constant 3 : index
    %c0_72 = arith.constant 0 : index
    %60 = tpu.strided_load %arg16[%c3, %c0_72] {strides = array<i32: 8, 1>} : memref<16x64xf32, #tpu.memory_space<vmem>>, vector<2x64xf32>
    %61 = arith.maximumf %59, %60 : vector<2x64xf32>
    %62 = arith.truncf %61 : vector<2x64xf32> to vector<2x64xbf16>
    %c1_73 = arith.constant 1 : index
    %c0_74 = arith.constant 0 : index
    %c0_75 = arith.constant 0 : index
    %63 = vector.load %arg8[%c1_73, %c0_74, %c0_75] : memref<4x64x128xbf16, #tpu.memory_space<vmem>>, vector<1x64x128xbf16>
    %64 = vector.shape_cast %63 : vector<1x64x128xbf16> to vector<64x128xbf16>
    %cst_76 = arith.constant dense<0.000000e+00> : vector<2x128xf32>
    %65 = tpu.matmul %62, %64, %cst_76 {dimension_numbers = #tpu.dot_dimension_numbers<[1], [0], [0], [1], [0, 0, 1, 1], [], []>} : vector<2x64xbf16>, vector<64x128xbf16>, vector<2x128xf32> -> vector<2x128xf32>
    %66 = arith.addf %58, %65 : vector<2x128xf32>
    %c4 = arith.constant 4 : index
    %c0_77 = arith.constant 0 : index
    %67 = tpu.strided_load %arg16[%c4, %c0_77] {strides = array<i32: 8, 1>} : memref<16x64xf32, #tpu.memory_space<vmem>>, vector<2x64xf32>
    %c5 = arith.constant 5 : index
    %c0_78 = arith.constant 0 : index
    %68 = tpu.strided_load %arg16[%c5, %c0_78] {strides = array<i32: 8, 1>} : memref<16x64xf32, #tpu.memory_space<vmem>>, vector<2x64xf32>
    %69 = arith.maximumf %67, %68 : vector<2x64xf32>
    %70 = arith.truncf %69 : vector<2x64xf32> to vector<2x64xbf16>
    %c2_79 = arith.constant 2 : index
    %c0_80 = arith.constant 0 : index
    %c0_81 = arith.constant 0 : index
    %71 = vector.load %arg8[%c2_79, %c0_80, %c0_81] : memref<4x64x128xbf16, #tpu.memory_space<vmem>>, vector<1x64x128xbf16>
    %72 = vector.shape_cast %71 : vector<1x64x128xbf16> to vector<64x128xbf16>
    %cst_82 = arith.constant dense<0.000000e+00> : vector<2x128xf32>
    %73 = tpu.matmul %70, %72, %cst_82 {dimension_numbers = #tpu.dot_dimension_numbers<[1], [0], [0], [1], [0, 0, 1, 1], [], []>} : vector<2x64xbf16>, vector<64x128xbf16>, vector<2x128xf32> -> vector<2x128xf32>
    %74 = arith.addf %66, %73 : vector<2x128xf32>
    %c6 = arith.constant 6 : index
    %c0_83 = arith.constant 0 : index
    %75 = tpu.strided_load %arg16[%c6, %c0_83] {strides = array<i32: 8, 1>} : memref<16x64xf32, #tpu.memory_space<vmem>>, vector<2x64xf32>
    %c7 = arith.constant 7 : index
    %c0_84 = arith.constant 0 : index
    %76 = tpu.strided_load %arg16[%c7, %c0_84] {strides = array<i32: 8, 1>} : memref<16x64xf32, #tpu.memory_space<vmem>>, vector<2x64xf32>
    %77 = arith.maximumf %75, %76 : vector<2x64xf32>
    %78 = arith.truncf %77 : vector<2x64xf32> to vector<2x64xbf16>
    %c3_85 = arith.constant 3 : index
    %c0_86 = arith.constant 0 : index
    %c0_87 = arith.constant 0 : index
    %79 = vector.load %arg8[%c3_85, %c0_86, %c0_87] : memref<4x64x128xbf16, #tpu.memory_space<vmem>>, vector<1x64x128xbf16>
    %80 = vector.shape_cast %79 : vector<1x64x128xbf16> to vector<64x128xbf16>
    %cst_88 = arith.constant dense<0.000000e+00> : vector<2x128xf32>
    %81 = tpu.matmul %78, %80, %cst_88 {dimension_numbers = #tpu.dot_dimension_numbers<[1], [0], [0], [1], [0, 0, 1, 1], [], []>} : vector<2x64xbf16>, vector<64x128xbf16>, vector<2x128xf32> -> vector<2x128xf32>
    %82 = arith.addf %74, %81 : vector<2x128xf32>
    %c0_89 = arith.constant 0 : index
    %c0_90 = arith.constant 0 : index
    %83 = vector.load %arg9[%c0_89, %c0_90] : memref<1x128xf32, #tpu.memory_space<vmem>>, vector<1x128xf32>
    %84 = vector.broadcast %83 : vector<1x128xf32> to vector<2x128xf32>
    %85 = arith.addf %82, %84 : vector<2x128xf32>
    %cst_91 = arith.constant 0.000000e+00 : f32
    %86 = vector.broadcast %cst_91 : f32 to vector<2x128xf32>
    %87 = arith.maximumf %85, %86 : vector<2x128xf32>
    %88 = arith.truncf %87 : vector<2x128xf32> to vector<2x128xbf16>
    %c0_92 = arith.constant 0 : index
    %c0_93 = arith.constant 0 : index
    %89 = vector.load %arg10[%c0_92, %c0_93] : memref<128x128xbf16, #tpu.memory_space<vmem>>, vector<128x128xbf16>
    %cst_94 = arith.constant dense<0.000000e+00> : vector<2x128xf32>
    %90 = tpu.matmul %88, %89, %cst_94 {dimension_numbers = #tpu.dot_dimension_numbers<[1], [0], [0], [1], [0, 0, 1, 1], [], []>} : vector<2x128xbf16>, vector<128x128xbf16>, vector<2x128xf32> -> vector<2x128xf32>
    %c0_95 = arith.constant 0 : index
    %c0_96 = arith.constant 0 : index
    %91 = vector.load %arg11[%c0_95, %c0_96] : memref<1x128xf32, #tpu.memory_space<vmem>>, vector<1x128xf32>
    %92 = vector.broadcast %91 : vector<1x128xf32> to vector<2x128xf32>
    %93 = arith.addf %90, %92 : vector<2x128xf32>
    %c0_97 = arith.constant 0 : index
    %c0_98 = arith.constant 0 : index
    %94 = vector.load %arg12[%c0_97, %c0_98] : memref<2x128xf32, #tpu.memory_space<vmem>>, vector<2x128xf32>
    tpu.vector_store %arg12[%c0_97, %c0_98], %93 {strides = array<i32>} : memref<2x128xf32, #tpu.memory_space<vmem>>, vector<2x128xf32>,
    return
  }
  func.func @transform_0(%arg0: i32) -> (i32, i32, i32) {
    %c0_i32 = arith.constant 0 : i32
    %c0_i32_0 = arith.constant 0 : i32
    %c0_i32_1 = arith.constant 0 : i32
    return %arg0, %c0_i32, %c0_i32_0 : i32, i32, i32
  }
  func.func @transform_1(%arg0: i32) -> (i32, i32) {
    %c0_i32 = arith.constant 0 : i32
    %c0_i32_0 = arith.constant 0 : i32
    %c0_i32_1 = arith.constant 0 : i32
    return %c0_i32, %c0_i32_0 : i32, i32
  }
  func.func @transform_2(%arg0: i32) -> (i32, i32) {
    %c0_i32 = arith.constant 0 : i32
    %c0_i32_0 = arith.constant 0 : i32
    %c0_i32_1 = arith.constant 0 : i32
    return %c0_i32, %c0_i32_0 : i32, i32
  }
  func.func @transform_3(%arg0: i32) -> (i32, i32) {
    %c0_i32 = arith.constant 0 : i32
    %c0_i32_0 = arith.constant 0 : i32
    %c0_i32_1 = arith.constant 0 : i32
    return %c0_i32, %c0_i32_0 : i32, i32
  }
  func.func @transform_4(%arg0: i32) -> (i32, i32) {
    %c0_i32 = arith.constant 0 : i32
    %c0_i32_0 = arith.constant 0 : i32
    %c0_i32_1 = arith.constant 0 : i32
    return %c0_i32, %c0_i32_0 : i32, i32
  }
  func.func @transform_5(%arg0: i32) -> (i32, i32) {
    %c0_i32 = arith.constant 0 : i32
    %c0_i32_0 = arith.constant 0 : i32
    %c0_i32_1 = arith.constant 0 : i32
    return %c0_i32, %c0_i32_0 : i32, i32
  }
  func.func @transform_6(%arg0: i32) -> (i32, i32) {
    %c0_i32 = arith.constant 0 : i32
    %c0_i32_0 = arith.constant 0 : i32
    %c0_i32_1 = arith.constant 0 : i32
    return %c0_i32, %c0_i32_0 : i32, i32
  }
  func.func @transform_7(%arg0: i32) -> (i32, i32, i32) {
    %c0_i32 = arith.constant 0 : i32
    %c0_i32_0 = arith.constant 0 : i32
    %c0_i32_1 = arith.constant 0 : i32
    %c0_i32_2 = arith.constant 0 : i32
    return %c0_i32, %c0_i32_0, %c0_i32_1 : i32, i32, i32
  }
  func.func @transform_8(%arg0: i32) -> (i32, i32) {
    %c0_i32 = arith.constant 0 : i32
    %c0_i32_0 = arith.constant 0 : i32
    %c0_i32_1 = arith.constant 0 : i32
    return %c0_i32, %c0_i32_0 : i32, i32
  }
  func.func @transform_9(%arg0: i32) -> (i32, i32) {
    %c0_i32 = arith.constant 0 : i32
    %c0_i32_0 = arith.constant 0 : i32
    %c0_i32_1 = arith.constant 0 : i32
    return %c0_i32, %c0_i32_0 : i32, i32
  }
  func.func @transform_10(%arg0: i32) -> (i32, i32) {
    %c0_i32 = arith.constant 0 : i32
    %c0_i32_0 = arith.constant 0 : i32
    %c0_i32_1 = arith.constant 0 : i32
    return %c0_i32, %c0_i32_0 : i32, i32
  }
  func.func @transform_11(%arg0: i32) -> (i32, i32) {
    %c0_i32 = arith.constant 0 : i32
    %c0_i32_0 = arith.constant 0 : i32
    return %arg0, %c0_i32 : i32, i32
  }
}

</mosaic_0001>

<llo_original>
// kernel: tpu_custom_call.1
$region0: #{tpu_custom_call.1}
  #allocation0 [shape = 'u32[]', space=smem, size = 0x4, offset = 0x4, fixed_abs, tag = 'smem constant byte address 0x4 - core index']
  #allocation1 [shape = 'u32[144,128]{1,0:T(1,128)}', space=vmem, size = 0x12000, scoped, tag = 'internal scratch']
  #allocation2 [shape = 'f32[2,18,16]{2,1,0:T(8,128)}', space=vmem, size = 0x6000, scoped, tag = 'scratch operand']
  #allocation3 [shape = 'f32[32,32]{1,0:T(8,128)}', space=vmem, size = 0x4000, scoped, tag = 'scratch operand']
  #allocation4 [shape = 'f32[2,10,32]{2,1,0:T(8,128)}', space=vmem, size = 0x4000, scoped, tag = 'scratch operand']
  #allocation5 [shape = 'f32[16,64]{1,0:T(8,128)}', space=vmem, size = 0x2000, scoped, tag = 'scratch operand']
  %s0 = inlined_call_operand.hbm [shape: bf16[2,16,16], index: 0, kind: input, shape index: {}]
  %s1 = inlined_call_operand.vmem [shape: bf16[48,32], index: 1, kind: input, shape index: {}]
  %s2 = inlined_call_operand.vmem [shape: f32[1,32], index: 2, kind: input, shape index: {}]
  %s3 = inlined_call_operand.vmem [shape: f32[1,32], index: 3, kind: input, shape index: {}]
  %s4 = inlined_call_operand.vmem [shape: bf16[96,64], index: 4, kind: input, shape index: {}]
  %s5 = inlined_call_operand.vmem [shape: f32[1,64], index: 5, kind: input, shape index: {}]
  %s6 = inlined_call_operand.vmem [shape: f32[1,64], index: 6, kind: input, shape index: {}]
  %s7 = inlined_call_operand.vmem [shape: bf16[4,64,128], index: 7, kind: input, shape index: {}]
  %s8 = inlined_call_operand.vmem [shape: f32[1,128], index: 8, kind: input, shape index: {}]
  %s9 = inlined_call_operand.hbm [shape: bf16[128,128], index: 9, kind: input, shape index: {}]
  %s10 = inlined_call_operand.vmem [shape: f32[1,128], index: 10, kind: input, shape index: {}]
  %s11 = inlined_call_operand.hbm [shape: f32[2,128], index: 11, kind: output, shape index: {}]
  %s12 = sld [smem:[#allocation0]]
  $region62: #{tpu_custom_call.1} parent=0
    _
  %s14 = ssub.s32 1, %s12
  %s15 = scalar_select 0, %s14, %s12
  $region1: #{tpu_custom_call.1} parent=0
    #allocation6 [shape = 'u8[8192]{0}', space=vmem, size = 0x2000, scoped, tag = 'input window, operand 0, single buffered']
    #allocation7 [shape = 's32[1]{0}', space=sflag, size = 0x4, scoped, tag = 'scoped memory for tpu_custom_call.1']
    #allocation8 [shape = 's32[1]{0}', space=sflag, size = 0x4, scoped, tag = 'scoped memory for tpu_custom_call.1']
    #allocation9 [shape = 'u8[32768]{0}', space=vmem, size = 0x8000, scoped, tag = 'input window, operand 9, single buffered']
    #allocation10 [shape = 's32[1]{0}', space=sflag, size = 0x4, scoped, tag = 'scoped memory for tpu_custom_call.1']
    #allocation11 [shape = 'u8[1024]{0}', space=vmem, size = 0x400, scoped, tag = 'output window, operand 0, single buffered']
    %16 = vsyncpa [#allocation7], 0
    %17 = vsyncpa [#allocation10], 0
    %18 = vsyncpa [#allocation8], 0
    // Predicated region
    $region2: #{tpu_custom_call.1} parent=1 // pred_check
      _
    $region3: #{tpu_custom_call.1} parent=1 // pred_check_branch
      %20 = sbr.rel (0) target = $region5
    $region4: #{tpu_custom_call.1} parent=1 // pred_region
      %s22 = ssub.s32 256, 256
      %23 = vsyncadd [#allocation7], %s22
      %s24 = sshll.u32 [#allocation6], 4
      %s25 = int_to_ptr.vmem [resolvable:$true] %s24
      %30 = dma.hbm_to_vmem [thread:$0]  %s0, 256, %s25, [#allocation7], 64, 64, 4
    $region5: #{tpu_custom_call.1} parent=1 // pred_fallthru
      _
    // Predicated region
    $region6: #{tpu_custom_call.1} parent=1 // pred_check
      _
    $region7: #{tpu_custom_call.1} parent=1 // pred_check_branch
      %32 = sbr.rel (0) target = $region9
    $region8: #{tpu_custom_call.1} parent=1 // pred_region
      _
    $region9: #{tpu_custom_call.1} parent=1 // pred_fallthru
      _
    // Predicated region
    $region10: #{tpu_custom_call.1} parent=1 // pred_check
      _
    $region11: #{tpu_custom_call.1} parent=1 // pred_check_branch
      %34 = sbr.rel (0) target = $region13
    $region12: #{tpu_custom_call.1} parent=1 // pred_region
      _
    $region13: #{tpu_custom_call.1} parent=1 // pred_fallthru
      _
    // Predicated region
    $region14: #{tpu_custom_call.1} parent=1 // pred_check
      _
    $region15: #{tpu_custom_call.1} parent=1 // pred_check_branch
      %36 = sbr.rel (0) target = $region17
    $region16: #{tpu_custom_call.1} parent=1 // pred_region
      _
    $region17: #{tpu_custom_call.1} parent=1 // pred_fallthru
      _
    // Predicated region
    $region18: #{tpu_custom_call.1} parent=1 // pred_check
      _
    $region19: #{tpu_custom_call.1} parent=1 // pred_check_branch
      %38 = sbr.rel (0) target = $region21
    $region20: #{tpu_custom_call.1} parent=1 // pred_region
      _
    $region21: #{tpu_custom_call.1} parent=1 // pred_fallthru
      _
    // Predicated region
    $region22: #{tpu_custom_call.1} parent=1 // pred_check
      _
    $region23: #{tpu_custom_call.1} parent=1 // pred_check_branch
      %40 = sbr.rel (0) target = $region25
    $region24: #{tpu_custom_call.1} parent=1 // pred_region
      _
    $region25: #{tpu_custom_call.1} parent=1 // pred_fallthru
      _
    // Predicated region
    $region26: #{tpu_custom_call.1} parent=1 // pred_check
      _
    $region27: #{tpu_custom_call.1} parent=1 // pred_check_branch
      %42 = sbr.rel (0) target = $region29
    $region28: #{tpu_custom_call.1} parent=1 // pred_region
      _
    $region29: #{tpu_custom_call.1} parent=1 // pred_fallthru
      _
    // Predicated region
    $region30: #{tpu_custom_call.1} parent=1 // pred_check
      _
    $region31: #{tpu_custom_call.1} parent=1 // pred_check_branch
      %44 = sbr.rel (0) target = $region33
    $region32: #{tpu_custom_call.1} parent=1 // pred_region
      _
    $region33: #{tpu_custom_call.1} parent=1 // pred_fallthru
      _
    // Predicated region
    $region34: #{tpu_custom_call.1} parent=1 // pred_check
      _
    $region35: #{tpu_custom_call.1} parent=1 // pred_check_branch
      %46 = sbr.rel (0) target = $region37
    $region36: #{tpu_custom_call.1} parent=1 // pred_region
      _
    $region37: #{tpu_custom_call.1} parent=1 // pred_fallthru
      _
    // Predicated region
    $region38: #{tpu_custom_call.1} parent=1 // pred_check
      _
    $region39: #{tpu_custom_call.1} parent=1 // pred_check_branch
      %48 = sbr.rel (0) target = $region41
    $region40: #{tpu_custom_call.1} parent=1 // pred_region
      %s50 = ssub.s32 1024, 1024
      %51 = vsyncadd [#allocation10], %s50
      %s52 = sshll.u32 [#allocation9], 4
      %s53 = int_to_ptr.vmem [resolvable:$true] %s52
      %58 = dma.hbm_to_vmem [thread:$0]  %s9, 1024, %s53, [#allocation10], 64, 64, 4
    $region41: #{tpu_custom_call.1} parent=1 // pred_fallthru
      _
    // Predicated region
    $region42: #{tpu_custom_call.1} parent=1 // pred_check
      _
    $region43: #{tpu_custom_call.1} parent=1 // pred_check_branch
      %60 = sbr.rel (0) target = $region45
    $region44: #{tpu_custom_call.1} parent=1 // pred_region
      _
    $region45: #{tpu_custom_call.1} parent=1 // pred_fallthru
      _
    // Predicated region
    $region46: #{tpu_custom_call.1} parent=1 // pred_check
      _
    $region47: #{tpu_custom_call.1} parent=1 // pred_check_branch
      %62 = sbr.rel (0) target = $region49
    $region48: #{tpu_custom_call.1} parent=1 // pred_region
      %63 = dma.done [#allocation7], 256
    $region49: #{tpu_custom_call.1} parent=1 // pred_fallthru
      _
    // Predicated region
    $region50: #{tpu_custom_call.1} parent=1 // pred_check
      _
    $region51: #{tpu_custom_call.1} parent=1 // pred_check_branch
      %65 = sbr.rel (0) target = $region53
    $region52: #{tpu_custom_call.1} parent=1 // pred_region
      %66 = dma.done [#allocation10], 1024
    $region53: #{tpu_custom_call.1} parent=1 // pred_fallthru
      _
    %vm68 = vcmask 122880
    %69 = vst.msk [vmem:[#allocation2] sm:$0x1] %vm68, 0.0
    %70 = vst.msk [vmem:[#allocation2 + $0x18] sm:$0x1] %vm68, 0.0
    %71 = vst.msk [vmem:[#allocation2 + $0x11] sm:$0x1] %vm68, 0.0
    %72 = vst.msk [vmem:[#allocation2 + $0x29] sm:$0x1] %vm68, 0.0
    %v73 = vld [vmem:[#allocation6] sm:$0xf]
    %v74 = vld [vmem:[#allocation6 + $0x4] sm:$0xf]
    %v75 = vld [vmem:[#allocation6 + $0x8] sm:$0xf]
    %v76 = vld [vmem:[#allocation6 + $0xc] sm:$0xf]
    %v77 = vunpack.c.l.bf16 %v73
    %v78 = vunpack.c.l.bf16 %v74
    %v79 = vunpack.c.l.bf16 %v75
    %v80 = vunpack.c.l.bf16 %v76
    %vm81 = vcmask 130048
    %82 = vst.msk [vmem:[#allocation2 + $0x1] sm:$0xff] %vm81, %v77
    %83 = vst.msk [vmem:[#allocation2 + $0x9] sm:$0xff] %vm81, %v78
    %84 = vst.msk [vmem:[#allocation2 + $0x19] sm:$0xff] %vm81, %v79
    %85 = vst.msk [vmem:[#allocation2 + $0x21] sm:$0xff] %vm81, %v80
    %v86 = vld [vmem:[#allocation2] sm:$0xff]
    %v87 = vld [vmem:[#allocation2 + $0x8] sm:$0xff]
    %v88 = vld [vmem:[#allocation2 + $0x18] sm:$0xff]
    %v89 = vld [vmem:[#allocation2 + $0x20] sm:$0xff]
    %v90 = vld [vmem:[#allocation2 + $0x1] sm:$0xff]
    %v91 = vld [vmem:[#allocation2 + $0x9] sm:$0xff]
    %v92 = vld [vmem:[#allocation2 + $0x19] sm:$0xff]
    %v93 = vld [vmem:[#allocation2 + $0x21] sm:$0xff]
    %v94 = vld [vmem:[#allocation2 + $0x2] sm:$0xff]
    %v95 = vld [vmem:[#allocation2 + $0xa] sm:$0xff]
    %v96 = vld [vmem:[#allocation2 + $0x1a] sm:$0xff]
    %v97 = vld [vmem:[#allocation2 + $0x22] sm:$0xff]
    %102 = vrot.lane.b32.xlu0 %v90, 16
    %v103 = vpop.permute.xlu0 %102
    %104 = vrot.lane.b32.xlu0 %v91, 16
    %v105 = vpop.permute.xlu0 %104
    %106 = vrot.lane.b32.xlu0 %v92, 16
    %v107 = vpop.permute.xlu0 %106
    %108 = vrot.lane.b32.xlu0 %v93, 16
    %v109 = vpop.permute.xlu0 %108
    %118 = vrot.lane.b32.xlu0 %v94, 32
    %v119 = vpop.permute.xlu0 %118
    %120 = vrot.lane.b32.xlu0 %v95, 32
    %v121 = vpop.permute.xlu0 %120
    %122 = vrot.lane.b32.xlu0 %v96, 32
    %v123 = vpop.permute.xlu0 %122
    %124 = vrot.lane.b32.xlu0 %v97, 32
    %v125 = vpop.permute.xlu0 %124
    %v130 = vsel %vm81, %v86, %v103
    %v131 = vsel %vm81, %v87, %v105
    %v132 = vsel %vm81, %v88, %v107
    %v133 = vsel %vm81, %v89, %v109
    %vm134 = vcmask 261120
    %v135 = vsel %vm134, %v130, %v119
    %v136 = vsel %vm134, %v131, %v121
    %v137 = vsel %vm134, %v132, %v123
    %v138 = vsel %vm134, %v133, %v125
    %v139 = vpack.c.bf16 %v136, %v135
    %v140 = vpack.c.bf16 %v138, %v137
    %v141 = vld [vmem:[%s1] sm:$0xf]
    %v142 = vld [vmem:[%s1 + $0x4] sm:$0xf]
    %v143 = vld [vmem:[%s1 + $0x8] sm:$0xf]
    %v144 = vld [vmem:[%s1 + $0xc] sm:$0xf]
    %v145 = vld [vmem:[%s1 + $0x10] sm:$0xf]
    %v146 = vld [vmem:[%s1 + $0x14] sm:$0xf]
    %v153 = vunpack.c.l.b16 %v141
    %v154 = vunpack.c.l.b16 %v142
    %v155 = vunpack.c.l.b16 %v143
    %v156 = vunpack.c.l.b16 %v144
    %v157 = vunpack.c.l.b16 %v145
    %v158 = vunpack.c.l.b16 %v146
    %v159 = vpack.c.b16 %v154, %v153
    %v160 = vpack.c.b16 %v156, %v155
    %v161 = vpack.c.b16 %v158, %v157
    %vm165 = vcmask 392192
    %v167 = vsel %vm165, %v139, 0
    %v170 = vsel %vm165, %v140, 0
    %172 = vmatprep.subr.bf16.mxu0 0
    %173 = vmatpush1.bf16.msra.mxu0 0
    %174 = vmatprep.subr.bf16.mxu0 0
    %175 = vmatpush1.bf16.msra.mxu0 0
    %176 = vmatprep.subr.bf16.mxu0 0
    %177 = vmatpush1.bf16.msra.mxu0 0
    %178 = vmatprep.subr.bf16.mxu0 0
    %179 = vmatpush1.bf16.msra.mxu0 0
    %180 = vmatprep.subr.bf16.mxu0 0
    %181 = vmatpush1.bf16.msra.mxu0 0
    %182 = vmatprep.subr.bf16.mxu0 0
    %183 = vmatpush1.bf16.msra.mxu0 %v161
    %184 = vmatprep.subr.bf16.mxu0 0
    %185 = vmatpush1.bf16.msra.mxu0 %v160
    %186 = vmatprep.subr.bf16.mxu0 0
    %187 = vmatpush1.bf16.msra.mxu0 %v159
    %188 = vmatprep.subr.bf16.mxu0 0
    %189 = vmatpush2.bf16.msra.mxu0 0
    %190 = vmatprep.subr.bf16.mxu0 0
    %191 = vmatpush2.bf16.msra.mxu0 0
    %192 = vmatprep.subr.bf16.mxu0 0
    %193 = vmatpush2.bf16.msra.mxu0 0
    %194 = vmatprep.subr.bf16.mxu0 0
    %195 = vmatpush2.bf16.msra.mxu0 0
    %196 = vmatprep.subr.bf16.mxu0 0
    %197 = vmatpush2.bf16.msra.mxu0 0
    %198 = vmatprep.subr.bf16.mxu0 0
    %199 = vmatpush2.bf16.msra.mxu0 0
    %200 = vmatprep.subr.bf16.mxu0 0
    %201 = vmatpush2.bf16.msra.mxu0 0
    %202 = vmatprep.subr.bf16.mxu0 0
    %203 = vmatpush2.bf16.msra.mxu0 0
    %204 = vmatprep.mubr.bf16.mxu0 0
    %205 = vmatmul.mubr.bf16.gmra.mxu0 %v167
    %v206 = vpop.f32.mrf.mxu0
    %v207 = vadd.f32 0.0, %v206
    %v208 = vpop.f32.mrf.mxu0
    %v209 = vpop.f32.mrf.mxu0
    %v210 = vadd.f32 0.0, %v209
    %v211 = vpop.f32.mrf.mxu0
    %212 = vmatprep.mubr.bf16.mxu0 0
    %213 = vmatmul.mubr.bf16.gmra.mxu0 %v170
    %v214 = vpop.f32.mrf.mxu0
    %v215 = vadd.f32 0.0, %v214
    %v216 = vpop.f32.mrf.mxu0
    %v217 = vpop.f32.mrf.mxu0
    %v218 = vadd.f32 0.0, %v217
    %v219 = vpop.f32.mrf.mxu0
    %220 = vdwg.mxu0
    %v221 = vld [vmem:[%s2] sm:$0x1]
    %v223 = vlaneseq
    %v224 = vshrl.u32 %v223, 7
    %v225 = vsub.s32 0, %v224
    %v226 = vrot.slane %v221, %v225
    %v228 = vmul.f32 %v207, %v226
    %v229 = vmul.f32 %v210, %v226
    %v230 = vmul.f32 %v215, %v226
    %v231 = vmul.f32 %v218, %v226
    %v232 = vld [vmem:[%s3] sm:$0x1]
    %v234 = vlaneseq
    %v235 = vshrl.u32 %v234, 7
    %v236 = vsub.s32 0, %v235
    %v237 = vrot.slane %v232, %v236
    %v239 = vadd.f32 %v228, %v237
    %v240 = vadd.f32 %v229, %v237
    %v241 = vadd.f32 %v230, %v237
    %v242 = vadd.f32 %v231, %v237
    %v243 = vmax.f32 %v239, 0.0
    %v244 = vmax.f32 %v240, 0.0
    %v245 = vmax.f32 %v241, 0.0
    %v246 = vmax.f32 %v242, 0.0
    %247 = vst.msk [vmem:[#allocation3] sm:$0xff] %vm134, %v243
    %248 = vst.msk [vmem:[#allocation3 + $0x8] sm:$0xff] %vm134, %v244
    %249 = vst.msk [vmem:[#allocation3 + $0x10] sm:$0xff] %vm134, %v245
    %250 = vst.msk [vmem:[#allocation3 + $0x18] sm:$0xff] %vm134, %v246
    %v251 = vld [vmem:[#allocation3] ss:$2 sm:$0xff]
    %s252 = scalar_lea.vmem [#allocation3], 16
    %v253 = vld [vmem:[%s252] ss:$2 sm:$0xff]
    %s254 = scalar_lea.vmem [#allocation3], 1
    %v255 = vld [vmem:[%s254] ss:$2 sm:$0xff]
    %s256 = scalar_lea.vmem [#allocation3], 17
    %v257 = vld [vmem:[%s256] ss:$2 sm:$0xff]
    %v258 = vmax.f32 %v251, %v255
    %v259 = vmax.f32 %v253, %v257
    %vm260 = vcmask 253952
    %261 = vst.msk [vmem:[#allocation4] sm:$0x1] %vm260, 0.0
    %262 = vst.msk [vmem:[#allocation4 + $0x10] sm:$0x1] %vm260, 0.0
    %263 = vst.msk [vmem:[#allocation4 + $0x9] sm:$0x1] %vm260, 0.0
    %264 = vst.msk [vmem:[#allocation4 + $0x19] sm:$0x1] %vm260, 0.0
    %265 = vst.msk [vmem:[#allocation4 + $0x1] sm:$0xff] %vm134, %v258
    %266 = vst.msk [vmem:[#allocation4 + $0x11] sm:$0xff] %vm134, %v259
    %v267 = vld [vmem:[#allocation4] sm:$0xff]
    %v268 = vld [vmem:[#allocation4 + $0x10] sm:$0xff]
    %v269 = vld [vmem:[#allocation4 + $0x1] sm:$0xff]
    %v270 = vld [vmem:[#allocation4 + $0x11] sm:$0xff]
    %v271 = vld [vmem:[#allocation4 + $0x2] sm:$0xff]
    %v272 = vld [vmem:[#allocation4 + $0x12] sm:$0xff]
    %275 = vrot.lane.b32.xlu0 %v269, 32
    %v276 = vpop.permute.xlu0 %275
    %277 = vrot.lane.b32.xlu0 %v270, 32
    %v278 = vpop.permute.xlu0 %277
    %283 = vrot.lane.b32.xlu0 %v271, 64
    %v284 = vpop.permute.xlu0 %283
    %285 = vrot.lane.b32.xlu0 %v272, 64
    %v286 = vpop.permute.xlu0 %285
    %v289 = vsel %vm134, %v267, %v276
    %v290 = vsel %vm134, %v268, %v278
    %vm291 = vcmask 523264
    %v292 = vsel %vm291, %v289, %v284
    %v293 = vsel %vm291, %v290, %v286
    %v294 = vpack.c.bf16 %v293, %v292
    %v295 = vld [vmem:[%s4] sm:$0xf]
    %v296 = vld [vmem:[%s4 + $0x4] sm:$0xf]
    %v297 = vld [vmem:[%s4 + $0x8] sm:$0xf]
    %v298 = vld [vmem:[%s4 + $0xc] sm:$0xf]
    %v299 = vld [vmem:[%s4 + $0x10] sm:$0xf]
    %v300 = vld [vmem:[%s4 + $0x14] sm:$0xf]
    %v301 = vld [vmem:[%s4 + $0x18] sm:$0xf]
    %v302 = vld [vmem:[%s4 + $0x1c] sm:$0xf]
    %v303 = vld [vmem:[%s4 + $0x20] sm:$0xf]
    %v304 = vld [vmem:[%s4 + $0x24] sm:$0xf]
    %v305 = vld [vmem:[%s4 + $0x28] sm:$0xf]
    %v306 = vld [vmem:[%s4 + $0x2c] sm:$0xf]
    %v319 = vunpack.c.l.b16 %v295
    %v320 = vunpack.c.l.b16 %v296
    %v321 = vunpack.c.l.b16 %v297
    %v322 = vunpack.c.l.b16 %v298
    %v323 = vunpack.c.l.b16 %v299
    %v324 = vunpack.c.l.b16 %v300
    %v325 = vunpack.c.l.b16 %v301
    %v326 = vunpack.c.l.b16 %v302
    %v327 = vunpack.c.l.b16 %v303
    %v328 = vunpack.c.l.b16 %v304
    %v329 = vunpack.c.l.b16 %v305
    %v330 = vunpack.c.l.b16 %v306
    %v331 = vpack.c.b16 %v320, %v319
    %v332 = vpack.c.b16 %v322, %v321
    %v333 = vpack.c.b16 %v324, %v323
    %v334 = vpack.c.b16 %v326, %v325
    %v335 = vpack.c.b16 %v328, %v327
    %v336 = vpack.c.b16 %v330, %v329
    %vm343 = vcmask 785408
    %v345 = vsel %vm343, %v294, 0
    %347 = vmatprep.subr.bf16.mxu0 0
    %348 = vmatpush1.bf16.msra.mxu0 0
    %349 = vmatprep.subr.bf16.mxu0 0
    %350 = vmatpush1.bf16.msra.mxu0 0
    %351 = vmatprep.subr.bf16.mxu0 0
    %352 = vmatpush1.bf16.msra.mxu0 %v336
    %353 = vmatprep.subr.bf16.mxu0 0
    %354 = vmatpush1.bf16.msra.mxu0 %v335
    %355 = vmatprep.subr.bf16.mxu0 0
    %356 = vmatpush1.bf16.msra.mxu0 %v334
    %357 = vmatprep.subr.bf16.mxu0 0
    %358 = vmatpush1.bf16.msra.mxu0 %v333
    %359 = vmatprep.subr.bf16.mxu0 0
    %360 = vmatpush1.bf16.msra.mxu0 %v332
    %361 = vmatprep.subr.bf16.mxu0 0
    %362 = vmatpush1.bf16.msra.mxu0 %v331
    %363 = vmatprep.subr.bf16.mxu0 0
    %364 = vmatpush2.bf16.msra.mxu0 0
    %365 = vmatprep.subr.bf16.mxu0 0
    %366 = vmatpush2.bf16.msra.mxu0 0
    %367 = vmatprep.subr.bf16.mxu0 0
    %368 = vmatpush2.bf16.msra.mxu0 0
    %369 = vmatprep.subr.bf16.mxu0 0
    %370 = vmatpush2.bf16.msra.mxu0 0
    %371 = vmatprep.subr.bf16.mxu0 0
    %372 = vmatpush2.bf16.msra.mxu0 0
    %373 = vmatprep.subr.bf16.mxu0 0
    %374 = vmatpush2.bf16.msra.mxu0 0
    %375 = vmatprep.subr.bf16.mxu0 0
    %376 = vmatpush2.bf16.msra.mxu0 0
    %377 = vmatprep.subr.bf16.mxu0 0
    %378 = vmatpush2.bf16.msra.mxu0 0
    %379 = vmatprep.mubr.bf16.mxu0 0
    %380 = vmatmul.mubr.bf16.gmra.mxu0 %v345
    %v381 = vpop.f32.mrf.mxu0
    %v382 = vadd.f32 0.0, %v381
    %v383 = vpop.f32.mrf.mxu0
    %v384 = vpop.f32.mrf.mxu0
    %v385 = vadd.f32 0.0, %v384
    %v386 = vpop.f32.mrf.mxu0
    %387 = vdwg.mxu0
    %v388 = vld [vmem:[%s5] sm:$0x1]
    %v390 = vlaneseq
    %v391 = vshrl.u32 %v390, 7
    %v392 = vsub.s32 0, %v391
    %v393 = vrot.slane %v388, %v392
    %v395 = vmul.f32 %v382, %v393
    %v396 = vmul.f32 %v385, %v393
    %v397 = vld [vmem:[%s6] sm:$0x1]
    %v399 = vlaneseq
    %v400 = vshrl.u32 %v399, 7
    %v401 = vsub.s32 0, %v400
    %v402 = vrot.slane %v397, %v401
    %v404 = vadd.f32 %v395, %v402
    %v405 = vadd.f32 %v396, %v402
    %v406 = vmax.f32 %v404, 0.0
    %v407 = vmax.f32 %v405, 0.0
    %408 = vst.msk [vmem:[#allocation5] sm:$0xff] %vm291, %v406
    %409 = vst.msk [vmem:[#allocation5 + $0x8] sm:$0xff] %vm291, %v407
    %v410 = vld [vmem:[#allocation5] ss:$8 sm:$0x3]
    %s411 = scalar_lea.vmem [#allocation5], 1
    %v412 = vld [vmem:[%s411] ss:$8 sm:$0x3]
    %v413 = vmax.f32 %v410, %v412
    %v414 = vpack.c.bf16 %v413, %v413
    %v415 = vld [vmem:[%s7] sm:$0xf]
    %v416 = vld [vmem:[%s7 + $0x4] sm:$0xf]
    %v417 = vld [vmem:[%s7 + $0x8] sm:$0xf]
    %v418 = vld [vmem:[%s7 + $0xc] sm:$0xf]
    %v419 = vld [vmem:[%s7 + $0x10] sm:$0xf]
    %v420 = vld [vmem:[%s7 + $0x14] sm:$0xf]
    %v421 = vld [vmem:[%s7 + $0x18] sm:$0xf]
    %v422 = vld [vmem:[%s7 + $0x1c] sm:$0xf]
    %s423 = scalar_lea.vmem [#allocation5], 2
    %v424 = vld [vmem:[%s423] ss:$8 sm:$0x3]
    %s425 = scalar_lea.vmem [#allocation5], 3
    %v426 = vld [vmem:[%s425] ss:$8 sm:$0x3]
    %v427 = vmax.f32 %v424, %v426
    %v428 = vpack.c.bf16 %v427, %v427
    %s429 = scalar_lea.vmem %s7, 32
    %v430 = vld [vmem:[%s429] sm:$0xf]
    %v431 = vld [vmem:[%s429 + $0x4] sm:$0xf]
    %v432 = vld [vmem:[%s429 + $0x8] sm:$0xf]
    %v433 = vld [vmem:[%s429 + $0xc] sm:$0xf]
    %v434 = vld [vmem:[%s429 + $0x10] sm:$0xf]
    %v435 = vld [vmem:[%s429 + $0x14] sm:$0xf]
    %v436 = vld [vmem:[%s429 + $0x18] sm:$0xf]
    %v437 = vld [vmem:[%s429 + $0x1c] sm:$0xf]
    %v446 = vunpack.c.l.b16 %v430
    %v447 = vunpack.c.l.b16 %v431
    %v448 = vunpack.c.l.b16 %v432
    %v449 = vunpack.c.l.b16 %v433
    %v450 = vunpack.c.l.b16 %v434
    %v451 = vunpack.c.l.b16 %v435
    %v452 = vunpack.c.l.b16 %v436
    %v453 = vunpack.c.l.b16 %v437
    %v454 = vpack.c.b16 %v447, %v446
    %v455 = vpack.c.b16 %v449, %v448
    %v456 = vpack.c.b16 %v451, %v450
    %v457 = vpack.c.b16 %v453, %v452
    %v463 = vsel %vm291, %v428, 0
    %465 = vmatprep.subr.bf16.mxu0 0
    %466 = vmatpush1.bf16.msra.mxu0 0
    %467 = vmatprep.subr.bf16.mxu0 0
    %468 = vmatpush1.bf16.msra.mxu0 0
    %469 = vmatprep.subr.bf16.mxu0 0
    %470 = vmatpush1.bf16.msra.mxu0 0
    %471 = vmatprep.subr.bf16.mxu0 0
    %472 = vmatpush1.bf16.msra.mxu0 0
    %473 = vmatprep.subr.bf16.mxu0 0
    %474 = vmatpush1.bf16.msra.mxu0 %v457
    %475 = vmatprep.subr.bf16.mxu0 0
    %476 = vmatpush1.bf16.msra.mxu0 %v456
    %477 = vmatprep.subr.bf16.mxu0 0
    %478 = vmatpush1.bf16.msra.mxu0 %v455
    %479 = vmatprep.subr.bf16.mxu0 0
    %480 = vmatpush1.bf16.msra.mxu0 %v454
    %481 = vmatprep.subr.bf16.mxu0 0
    %482 = vmatpush2.bf16.msra.mxu0 0
    %483 = vmatprep.subr.bf16.mxu0 0
    %484 = vmatpush2.bf16.msra.mxu0 0
    %485 = vmatprep.subr.bf16.mxu0 0
    %486 = vmatpush2.bf16.msra.mxu0 0
    %487 = vmatprep.subr.bf16.mxu0 0
    %488 = vmatpush2.bf16.msra.mxu0 0
    %489 = vmatprep.subr.bf16.mxu0 0
    %490 = vmatpush2.bf16.msra.mxu0 0
    %491 = vmatprep.subr.bf16.mxu0 0
    %492 = vmatpush2.bf16.msra.mxu0 0
    %493 = vmatprep.subr.bf16.mxu0 0
    %494 = vmatpush2.bf16.msra.mxu0 0
    %495 = vmatprep.subr.bf16.mxu0 0
    %496 = vmatpush2.bf16.msra.mxu0 0
    %497 = vmatprep.mubr.bf16.mxu0 0
    %498 = vmatmul.mubr.bf16.gmra.mxu0 %v463
    %v499 = vpop.f32.mrf.mxu0
    %v500 = vadd.f32 0.0, %v499
    %v501 = vpop.f32.mrf.mxu0
    %v502 = vpop.f32.mrf.mxu0
    %v503 = vpop.f32.mrf.mxu0
    %504 = vdwg.mxu0
    %v513 = vunpack.c.l.b16 %v415
    %v514 = vunpack.c.l.b16 %v416
    %v515 = vunpack.c.l.b16 %v417
    %v516 = vunpack.c.l.b16 %v418
    %v517 = vunpack.c.l.b16 %v419
    %v518 = vunpack.c.l.b16 %v420
    %v519 = vunpack.c.l.b16 %v421
    %v520 = vunpack.c.l.b16 %v422
    %v521 = vpack.c.b16 %v514, %v513
    %v522 = vpack.c.b16 %v516, %v515
    %v523 = vpack.c.b16 %v518, %v517
    %v524 = vpack.c.b16 %v520, %v519
    %v530 = vsel %vm291, %v414, 0
    %532 = vmatprep.subr.bf16.mxu0 0
    %533 = vmatpush1.bf16.msra.mxu0 0
    %534 = vmatprep.subr.bf16.mxu0 0
    %535 = vmatpush1.bf16.msra.mxu0 0
    %536 = vmatprep.subr.bf16.mxu0 0
    %537 = vmatpush1.bf16.msra.mxu0 0
    %538 = vmatprep.subr.bf16.mxu0 0
    %539 = vmatpush1.bf16.msra.mxu0 0
    %540 = vmatprep.subr.bf16.mxu0 0
    %541 = vmatpush1.bf16.msra.mxu0 %v524
    %542 = vmatprep.subr.bf16.mxu0 0
    %543 = vmatpush1.bf16.msra.mxu0 %v523
    %544 = vmatprep.subr.bf16.mxu0 0
    %545 = vmatpush1.bf16.msra.mxu0 %v522
    %546 = vmatprep.subr.bf16.mxu0 0
    %547 = vmatpush1.bf16.msra.mxu0 %v521
    %548 = vmatprep.subr.bf16.mxu0 0
    %549 = vmatpush2.bf16.msra.mxu0 0
    %550 = vmatprep.subr.bf16.mxu0 0
    %551 = vmatpush2.bf16.msra.mxu0 0
    %552 = vmatprep.subr.bf16.mxu0 0
    %553 = vmatpush2.bf16.msra.mxu0 0
    %554 = vmatprep.subr.bf16.mxu0 0
    %555 = vmatpush2.bf16.msra.mxu0 0
    %556 = vmatprep.subr.bf16.mxu0 0
    %557 = vmatpush2.bf16.msra.mxu0 0
    %558 = vmatprep.subr.bf16.mxu0 0
    %559 = vmatpush2.bf16.msra.mxu0 0
    %560 = vmatprep.subr.bf16.mxu0 0
    %561 = vmatpush2.bf16.msra.mxu0 0
    %562 = vmatprep.subr.bf16.mxu0 0
    %563 = vmatpush2.bf16.msra.mxu0 0
    %564 = vmatprep.mubr.bf16.mxu0 0
    %565 = vmatmul.mubr.bf16.gmra.mxu0 %v530
    %v566 = vpop.f32.mrf.mxu0
    %v567 = vadd.f32 %v500, %v566
    %v568 = vpop.f32.mrf.mxu0
    %v569 = vpop.f32.mrf.mxu0
    %v570 = vpop.f32.mrf.mxu0
    %571 = vdwg.mxu0
    %s572 = scalar_lea.vmem [#allocation5], 4
    %v573 = vld [vmem:[%s572] ss:$8 sm:$0x3]
    %s574 = scalar_lea.vmem [#allocation5], 5
    %v575 = vld [vmem:[%s574] ss:$8 sm:$0x3]
    %v576 = vmax.f32 %v573, %v575
    %v577 = vpack.c.bf16 %v576, %v576
    %s578 = scalar_lea.vmem %s7, 64
    %v579 = vld [vmem:[%s578] sm:$0xf]
    %v580 = vld [vmem:[%s578 + $0x4] sm:$0xf]
    %v581 = vld [vmem:[%s578 + $0x8] sm:$0xf]
    %v582 = vld [vmem:[%s578 + $0xc] sm:$0xf]
    %v583 = vld [vmem:[%s578 + $0x10] sm:$0xf]
    %v584 = vld [vmem:[%s578 + $0x14] sm:$0xf]
    %v585 = vld [vmem:[%s578 + $0x18] sm:$0xf]
    %v586 = vld [vmem:[%s578 + $0x1c] sm:$0xf]
    %v595 = vunpack.c.l.b16 %v579
    %v596 = vunpack.c.l.b16 %v580
    %v597 = vunpack.c.l.b16 %v581
    %v598 = vunpack.c.l.b16 %v582
    %v599 = vunpack.c.l.b16 %v583
    %v600 = vunpack.c.l.b16 %v584
    %v601 = vunpack.c.l.b16 %v585
    %v602 = vunpack.c.l.b16 %v586
    %v603 = vpack.c.b16 %v596, %v595
    %v604 = vpack.c.b16 %v598, %v597
    %v605 = vpack.c.b16 %v600, %v599
    %v606 = vpack.c.b16 %v602, %v601
    %v612 = vsel %vm291, %v577, 0
    %614 = vmatprep.subr.bf16.mxu0 0
    %615 = vmatpush1.bf16.msra.mxu0 0
    %616 = vmatprep.subr.bf16.mxu0 0
    %617 = vmatpush1.bf16.msra.mxu0 0
    %618 = vmatprep.subr.bf16.mxu0 0
    %619 = vmatpush1.bf16.msra.mxu0 0
    %620 = vmatprep.subr.bf16.mxu0 0
    %621 = vmatpush1.bf16.msra.mxu0 0
    %622 = vmatprep.subr.bf16.mxu0 0
    %623 = vmatpush1.bf16.msra.mxu0 %v606
    %624 = vmatprep.subr.bf16.mxu0 0
    %625 = vmatpush1.bf16.msra.mxu0 %v605
    %626 = vmatprep.subr.bf16.mxu0 0
    %627 = vmatpush1.bf16.msra.mxu0 %v604
    %628 = vmatprep.subr.bf16.mxu0 0
    %629 = vmatpush1.bf16.msra.mxu0 %v603
    %630 = vmatprep.subr.bf16.mxu0 0
    %631 = vmatpush2.bf16.msra.mxu0 0
    %632 = vmatprep.subr.bf16.mxu0 0
    %633 = vmatpush2.bf16.msra.mxu0 0
    %634 = vmatprep.subr.bf16.mxu0 0
    %635 = vmatpush2.bf16.msra.mxu0 0
    %636 = vmatprep.subr.bf16.mxu0 0
    %637 = vmatpush2.bf16.msra.mxu0 0
    %638 = vmatprep.subr.bf16.mxu0 0
    %639 = vmatpush2.bf16.msra.mxu0 0
    %640 = vmatprep.subr.bf16.mxu0 0
    %641 = vmatpush2.bf16.msra.mxu0 0
    %642 = vmatprep.subr.bf16.mxu0 0
    %643 = vmatpush2.bf16.msra.mxu0 0
    %644 = vmatprep.subr.bf16.mxu0 0
    %645 = vmatpush2.bf16.msra.mxu0 0
    %646 = vmatprep.mubr.bf16.mxu0 0
    %647 = vmatmul.mubr.bf16.gmra.mxu0 %v612
    %v648 = vpop.f32.mrf.mxu0
    %v649 = vadd.f32 0.0, %v648
    %v650 = vpop.f32.mrf.mxu0
    %v651 = vpop.f32.mrf.mxu0
    %v652 = vpop.f32.mrf.mxu0
    %653 = vdwg.mxu0
    %v654 = vadd.f32 %v567, %v649
    %s655 = scalar_lea.vmem [#allocation5], 6
    %v656 = vld [vmem:[%s655] ss:$8 sm:$0x3]
    %s657 = scalar_lea.vmem [#allocation5], 7
    %v658 = vld [vmem:[%s657] ss:$8 sm:$0x3]
    %v659 = vmax.f32 %v656, %v658
    %v660 = vpack.c.bf16 %v659, %v659
    %s661 = scalar_lea.vmem %s7, 96
    %v662 = vld [vmem:[%s661] sm:$0xf]
    %v663 = vld [vmem:[%s661 + $0x4] sm:$0xf]
    %v664 = vld [vmem:[%s661 + $0x8] sm:$0xf]
    %v665 = vld [vmem:[%s661 + $0xc] sm:$0xf]
    %v666 = vld [vmem:[%s661 + $0x10] sm:$0xf]
    %v667 = vld [vmem:[%s661 + $0x14] sm:$0xf]
    %v668 = vld [vmem:[%s661 + $0x18] sm:$0xf]
    %v669 = vld [vmem:[%s661 + $0x1c] sm:$0xf]
    %v678 = vunpack.c.l.b16 %v662
    %v679 = vunpack.c.l.b16 %v663
    %v680 = vunpack.c.l.b16 %v664
    %v681 = vunpack.c.l.b16 %v665
    %v682 = vunpack.c.l.b16 %v666
    %v683 = vunpack.c.l.b16 %v667
    %v684 = vunpack.c.l.b16 %v668
    %v685 = vunpack.c.l.b16 %v669
    %v686 = vpack.c.b16 %v679, %v678
    %v687 = vpack.c.b16 %v681, %v680
    %v688 = vpack.c.b16 %v683, %v682
    %v689 = vpack.c.b16 %v685, %v684
    %v695 = vsel %vm291, %v660, 0
    %697 = vmatprep.subr.bf16.mxu0 0
    %698 = vmatpush1.bf16.msra.mxu0 0
    %699 = vmatprep.subr.bf16.mxu0 0
    %700 = vmatpush1.bf16.msra.mxu0 0
    %701 = vmatprep.subr.bf16.mxu0 0
    %702 = vmatpush1.bf16.msra.mxu0 0
    %703 = vmatprep.subr.bf16.mxu0 0
    %704 = vmatpush1.bf16.msra.mxu0 0
    %705 = vmatprep.subr.bf16.mxu0 0
    %706 = vmatpush1.bf16.msra.mxu0 %v689
    %707 = vmatprep.subr.bf16.mxu0 0
    %708 = vmatpush1.bf16.msra.mxu0 %v688
    %709 = vmatprep.subr.bf16.mxu0 0
    %710 = vmatpush1.bf16.msra.mxu0 %v687
    %711 = vmatprep.subr.bf16.mxu0 0
    %712 = vmatpush1.bf16.msra.mxu0 %v686
    %713 = vmatprep.subr.bf16.mxu0 0
    %714 = vmatpush2.bf16.msra.mxu0 0
    %715 = vmatprep.subr.bf16.mxu0 0
    %716 = vmatpush2.bf16.msra.mxu0 0
    %717 = vmatprep.subr.bf16.mxu0 0
    %718 = vmatpush2.bf16.msra.mxu0 0
    %719 = vmatprep.subr.bf16.mxu0 0
    %720 = vmatpush2.bf16.msra.mxu0 0
    %721 = vmatprep.subr.bf16.mxu0 0
    %722 = vmatpush2.bf16.msra.mxu0 0
    %723 = vmatprep.subr.bf16.mxu0 0
    %724 = vmatpush2.bf16.msra.mxu0 0
    %725 = vmatprep.subr.bf16.mxu0 0
    %726 = vmatpush2.bf16.msra.mxu0 0
    %727 = vmatprep.subr.bf16.mxu0 0
    %728 = vmatpush2.bf16.msra.mxu0 0
    %729 = vmatprep.mubr.bf16.mxu0 0
    %730 = vmatmul.mubr.bf16.gmra.mxu0 %v695
    %v731 = vpop.f32.mrf.mxu0
    %v732 = vadd.f32 0.0, %v731
    %v733 = vpop.f32.mrf.mxu0
    %v734 = vpop.f32.mrf.mxu0
    %v735 = vpop.f32.mrf.mxu0
    %736 = vdwg.mxu0
    %v737 = vadd.f32 %v654, %v732
    %v738 = vld [vmem:[%s8] sm:$0x1]
    %v740 = vlaneseq
    %v741 = vshrl.u32 %v740, 7
    %v742 = vsub.s32 0, %v741
    %v743 = vrot.slane %v738, %v742
    %v745 = vadd.f32 %v737, %v743
    %v746 = vmax.f32 %v745, 0.0
    %v747 = vpack.c.bf16 %v746, %v746
    %v748 = vld [vmem:[#allocation9] sm:$0xf]
    %v749 = vld [vmem:[#allocation9 + $0x4] sm:$0xf]
    %v750 = vld [vmem:[#allocation9 + $0x8] sm:$0xf]
    %v751 = vld [vmem:[#allocation9 + $0xc] sm:$0xf]
    %v752 = vld [vmem:[#allocation9 + $0x10] sm:$0xf]
    %v753 = vld [vmem:[#allocation9 + $0x14] sm:$0xf]
    %v754 = vld [vmem:[#allocation9 + $0x18] sm:$0xf]
    %v755 = vld [vmem:[#allocation9 + $0x1c] sm:$0xf]
    %v756 = vld [vmem:[#allocation9 + $0x20] sm:$0xf]
    %v757 = vld [vmem:[#allocation9 + $0x24] sm:$0xf]
    %v758 = vld [vmem:[#allocation9 + $0x28] sm:$0xf]
    %v759 = vld [vmem:[#allocation9 + $0x2c] sm:$0xf]
    %v760 = vld [vmem:[#allocation9 + $0x30] sm:$0xf]
    %v761 = vld [vmem:[#allocation9 + $0x34] sm:$0xf]
    %v762 = vld [vmem:[#allocation9 + $0x38] sm:$0xf]
    %v763 = vld [vmem:[#allocation9 + $0x3c] sm:$0xf]
    %v764 = vld [vmem:[%s10] sm:$0x1]
    %v766 = vlaneseq
    %v767 = vshrl.u32 %v766, 7
    %v768 = vsub.s32 0, %v767
    %v769 = vrot.slane %v764, %v768
    %v787 = vunpack.c.l.b16 %v748
    %v788 = vunpack.c.l.b16 %v749
    %v789 = vunpack.c.l.b16 %v750
    %v790 = vunpack.c.l.b16 %v751
    %v791 = vunpack.c.l.b16 %v752
    %v792 = vunpack.c.l.b16 %v753
    %v793 = vunpack.c.l.b16 %v754
    %v794 = vunpack.c.l.b16 %v755
    %v795 = vunpack.c.l.b16 %v756
    %v796 = vunpack.c.l.b16 %v757
    %v797 = vunpack.c.l.b16 %v758
    %v798 = vunpack.c.l.b16 %v759
    %v799 = vunpack.c.l.b16 %v760
    %v800 = vunpack.c.l.b16 %v761
    %v801 = vunpack.c.l.b16 %v762
    %v802 = vunpack.c.l.b16 %v763
    %v803 = vpack.c.b16 %v788, %v787
    %v804 = vpack.c.b16 %v790, %v789
    %v805 = vpack.c.b16 %v792, %v791
    %v806 = vpack.c.b16 %v794, %v793
    %v807 = vpack.c.b16 %v796, %v795
    %v808 = vpack.c.b16 %v798, %v797
    %v809 = vpack.c.b16 %v800, %v799
    %v810 = vpack.c.b16 %v802, %v801
    %819 = vmatprep.subr.bf16.mxu0 0
    %820 = vmatpush1.bf16.msra.mxu0 %v810
    %821 = vmatprep.subr.bf16.mxu0 0
    %822 = vmatpush1.bf16.msra.mxu0 %v809
    %823 = vmatprep.subr.bf16.mxu0 0
    %824 = vmatpush1.bf16.msra.mxu0 %v808
    %825 = vmatprep.subr.bf16.mxu0 0
    %826 = vmatpush1.bf16.msra.mxu0 %v807
    %827 = vmatprep.subr.bf16.mxu0 0
    %828 = vmatpush1.bf16.msra.mxu0 %v806
    %829 = vmatprep.subr.bf16.mxu0 0
    %830 = vmatpush1.bf16.msra.mxu0 %v805
    %831 = vmatprep.subr.bf16.mxu0 0
    %832 = vmatpush1.bf16.msra.mxu0 %v804
    %833 = vmatprep.subr.bf16.mxu0 0
    %834 = vmatpush1.bf16.msra.mxu0 %v803
    %835 = vmatprep.subr.bf16.mxu0 0
    %836 = vmatpush2.bf16.msra.mxu0 0
    %837 = vmatprep.subr.bf16.mxu0 0
    %838 = vmatpush2.bf16.msra.mxu0 0
    %839 = vmatprep.subr.bf16.mxu0 0
    %840 = vmatpush2.bf16.msra.mxu0 0
    %841 = vmatprep.subr.bf16.mxu0 0
    %842 = vmatpush2.bf16.msra.mxu0 0
    %843 = vmatprep.subr.bf16.mxu0 0
    %844 = vmatpush2.bf16.msra.mxu0 0
    %845 = vmatprep.subr.bf16.mxu0 0
    %846 = vmatpush2.bf16.msra.mxu0 0
    %847 = vmatprep.subr.bf16.mxu0 0
    %848 = vmatpush2.bf16.msra.mxu0 0
    %849 = vmatprep.subr.bf16.mxu0 0
    %850 = vmatpush2.bf16.msra.mxu0 0
    %851 = vmatprep.mubr.bf16.mxu0 0
    %852 = vmatmul.mubr.bf16.gmra.mxu0 %v747
    %v853 = vpop.f32.mrf.mxu0
    %v854 = vadd.f32 %v769, %v853
    %v855 = vpop.f32.mrf.mxu0
    %v856 = vpop.f32.mrf.mxu0
    %v857 = vpop.f32.mrf.mxu0
    %858 = vdwg.mxu0
    %859 = vst [vmem:[#allocation11] sm:$0x3] %v854
    // Predicated region
    $region54: #{tpu_custom_call.1} parent=1 // pred_check
      _
    $region55: #{tpu_custom_call.1} parent=1 // pred_check_branch
      %861 = sbr.rel (0) target = $region57
    $region56: #{tpu_custom_call.1} parent=1 // pred_region
      %s863 = ssub.s32 32, 32
      %864 = vsyncadd [#allocation8], %s863
      %s866 = sshll.u32 [#allocation11], 4
      %s867 = int_to_ptr.vmem [resolvable:$true] %s866
      %869 = dma.vmem_to_hbm [thread:$0]  %s867, 32, %s11, [#allocation8]
    $region57: #{tpu_custom_call.1} parent=1 // pred_fallthru
      _
    // Predicated region
    $region58: #{tpu_custom_call.1} parent=1 // pred_check
      _
    $region59: #{tpu_custom_call.1} parent=1 // pred_check_branch
      %871 = sbr.rel (0) target = $region61
    $region60: #{tpu_custom_call.1} parent=1 // pred_region
      %872 = dma.done [#allocation8], 32
    $region61: #{tpu_custom_call.1} parent=1 // pred_fallthru
      _
    %873 = vsyncpa [#allocation7], 1
    %874 = vsyncpa [#allocation10], 1
    %875 = vsyncpa [#allocation8], 1

</llo_original>
